<compile_context>
chip_gen: v7x
topology: tpu7x:2x2x1
jax: 0.10.0
libtpu: 0.0.40
codegen_flags: <defaults>
</compile_context>

<pallas_src>
import jax
import jax.numpy as jnp
from jax import lax
from jax.experimental import pallas as pl
from jax.experimental.pallas import tpu as pltpu

_F32 = 4  # bytes


def attention_kernel(x_ref, w1_ref, b1_ref, w2_ref, out_ref, wout_ref):
    """One grid step processes a (TB, N, H) slab of batch elements.

    score = ReLU(x @ W1 + b1) . w2   (per token)
    w     = softmax(score over tokens)
    out   = sum_N x * w
    b2 is omitted: softmax is shift-invariant, so a constant offset on the
    scores cannot change either returned tensor.
    """
    x = x_ref[...]                                            # (TB, N, H)

    # ---- Linear 1 + ReLU on the MXU. dot_general over the last dim keeps the
    # (TB, N, H) layout: no reshape pair, no relayout copies when N % 8 != 0.
    # TODO(synk): cast x / W1 to bf16 here if H grows large enough to make the
    # kernel MXU-bound and ~1e-3 relative error is acceptable.
    h = lax.dot_general(
        x, w1_ref[...],
        dimension_numbers=(((2,), (0,)), ((), ())),
        preferred_element_type=jnp.float32)                   # (TB, N, H)
    h = jnp.maximum(h + b1_ref[...], 0.0)

    # ---- Linear 2 (output dim == 1): VPU multiply + lane reduce straight to a
    # lane-dense (TB, N) score tensor; the MXU stays free.
    s = jnp.sum(h * w2_ref[...], axis=-1)                     # (TB, N)

    # ---- Softmax over tokens, fully lane-dense on (TB, N) vregs.
    s_max = jnp.max(s, axis=-1, keepdims=True)                # (TB, 1)
    e = jnp.exp(s - s_max)                                    # (TB, N)  (EUP)
    denom = jnp.sum(e, axis=-1, keepdims=True)                # (TB, 1)
    w = e / denom                                             # exact: w is a returned output

    wout_ref[...] = w                                         # (TB, N), no relayout
    # ---- Weighted pooling over tokens: broadcast multiply + sublane reduce.
    out_ref[...] = jnp.sum(x * w[:, :, None], axis=1)         # (TB, H)


# ---------------------------------------------------------------------------
# VMEM accounting (includes in-kernel temporaries and double-buffered params)
# ---------------------------------------------------------------------------
def _fixed_vmem_bytes(H):
    # W1, b1, w2 row: BlockSpec double-buffers even resident operands.
    return 2 * (H * H + 2 * H) * _F32


def _per_row_vmem_bytes(N, H):
    # Per batch row: 2x x-block (double-buffered stream) + h intermediate
    # + ~2 elementwise-product temps + 2x (H,) and (N,) output rows.
    return (5 * N * H + 2 * (H + N)) * _F32


def _per_step_vmem_bytes(tb, N, H):
    return _fixed_vmem_bytes(H) + tb * _per_row_vmem_bytes(N, H)


def _vmem_capacity_bytes():
    try:
        return int(pltpu.get_tpu_info().vmem_capacity_bytes)
    except Exception:
        return 64 << 20  # conservative fallback (v7x per-TensorCore VMEM)


def _choose_batch_block(B, N, H, budget_bytes):
    """Largest sublane-aligned (multiple of 8) TB whose full footprint —
    double-buffered streams, double-buffered params, and in-kernel temporaries
    — fits the budget, preferring >= 2 grid blocks so both v7x TensorCores get
    work (the extra grid step is ~0.35 us noise on single-TC v5e/v6e)."""
    fixed = _fixed_vmem_bytes(H)
    per_row = _per_row_vmem_bytes(N, H)
    fit_units = max(0, (budget_bytes - fixed) // (8 * per_row))
    need_units = -(-B // 8)                      # ceil(B / 8)
    if fit_units == 0:
        # TODO(synk): tile N with an online-softmax accumulator for configs
        # where even a single (8, N, H) slab plus temporaries exceeds VMEM.
        return 8
    units = min(need_units, fit_units)
    # Split into at least 2 blocks when the batch allows it (megacore sharding).
    if need_units >= 2 and -(-B // (units * 8)) < 2:
        units = min(units, -(-need_units // 2))
    return units * 8


def attention_forward(x, w1, b1, w2, b2=None):
    """x: (B, N, H) f32; w1: (H, H) pre-transposed (kernel does x @ w1);
    b1: (1, H); w2: (H, 1); b2: (1, 1) (unused — softmax shift invariance).
    Returns (pooled (B, H), attention weights (B, N))."""
    B, N, H = x.shape
    del b2  # constant score offset cancels inside softmax; cannot affect outputs
    w2_row = w2.reshape(1, H)                    # lane-dense row for the VPU reduce

    cap = _vmem_capacity_bytes()
    budget = int(cap * 0.70)                     # ≈44 MiB on v7x, ≈90 MiB on v5e/v6e
    TB = _choose_batch_block(B, N, H, budget)

    # No divisibility requirement on B: pad the batch up to a TB multiple.
    # Padded rows are zeros -> per-token scores are a constant -> uniform
    # softmax (no NaNs); they are sliced away below.
    B_pad = -(-B // TB) * TB
    x_in = jnp.pad(x, ((0, B_pad - B), (0, 0), (0, 0))) if B_pad != B else x
    grid = (B_pad // TB,)

    per_step = _per_step_vmem_bytes(TB, N, H)
    vmem_limit = max(32 << 20,
                     min(int(1.25 * per_step) + (4 << 20), int(cap * 0.90)))

    out_shapes = (
        jax.ShapeDtypeStruct((B_pad, H), jnp.float32),
        jax.ShapeDtypeStruct((B_pad, N), jnp.float32),
    )
    out, w = pl.pallas_call(
        attention_kernel,
        out_shape=out_shapes,
        grid_spec=pltpu.PrefetchScalarGridSpec(
            num_scalar_prefetch=0,
            grid=grid,
            in_specs=[
                pl.BlockSpec((TB, N, H), lambda b: (b, 0, 0)),  # x (streamed)
                pl.BlockSpec((H, H), lambda b: (0, 0)),         # W1^T (resident)
                pl.BlockSpec((1, H), lambda b: (0, 0)),         # b1 (resident)
                pl.BlockSpec((1, H), lambda b: (0, 0)),         # w2 row (resident)
            ],
            out_specs=[
                pl.BlockSpec((TB, H), lambda b: (b, 0)),        # pooled output
                pl.BlockSpec((TB, N), lambda b: (b, 0)),        # attention weights
            ],
        ),
        compiler_params=pltpu.CompilerParams(
            dimension_semantics=("parallel",),   # v7x: batch blocks split across TCs
            vmem_limit_bytes=vmem_limit,
        ),
    )(x_in, w1, b1, w2_row)
    return out[:B], w[:B]


def reference_forward(x, w1, b1, w2, b2):
    """Pure-JAX reference mirroring the PyTorch module (including b2)."""
    h = jnp.maximum(x @ w1 + b1, 0.0)            # (B, N, H)
    s = (h @ w2 + b2[0, 0])[..., 0]              # (B, N)
    w = jax.nn.softmax(s, axis=-1)               # (B, N)
    out = jnp.sum(x * w[..., None], axis=1)      # (B, H)
    return out, w


if __name__ == "__main__":
    B, N, H = 2, 8, 32
    key = jax.random.PRNGKey(0)
    kx, kw1, kb1, kw2, kb2 = jax.random.split(key, 5)

    x = jax.random.normal(kx, (B, N, H), dtype=jnp.float32)

    # Deterministic synthetic parameters (shapes from nn.Linear(in_dim, in_dim)
    # and nn.Linear(in_dim, 1)); stored pre-transposed so the kernel does x @ W.
    w1 = jax.random.normal(kw1, (H, H), dtype=jnp.float32) * (1.0 / jnp.sqrt(H))
    b1 = jax.random.normal(kb1, (1, H), dtype=jnp.float32) * 0.1
    w2 = jax.random.normal(kw2, (H, 1), dtype=jnp.float32) * (1.0 / jnp.sqrt(H))
    b2 = jax.random.normal(kb2, (1, 1), dtype=jnp.float32) * 0.1

    out, w = attention_forward(x, w1, b1, w2, b2)
    out = jax.block_until_ready(out)
    w = jax.block_until_ready(w)

    out_ref, w_ref = reference_forward(x, w1, b1, w2, b2)
    assert jnp.allclose(out, out_ref, atol=1e-3, rtol=1e-3), "pooled output mismatch"
    assert jnp.allclose(w, w_ref, atol=1e-3, rtol=1e-3), "attention weights mismatch"
    assert jnp.allclose(jnp.sum(w, axis=-1), 1.0, atol=1e-4), "softmax not normalized"

    print("KERNEL_OK")
</pallas_src>

<mosaic_0001>
module attributes {stable_mosaic.version = 11 : i64} {
  func.func @attention_kernel(%arg0: i32, %arg1: memref<8x8x32xf32, #tpu.memory_space<vmem>>, %arg2: memref<32x32xf32, #tpu.memory_space<vmem>>, %arg3: memref<1x32xf32, #tpu.memory_space<vmem>>, %arg4: memref<1x32xf32, #tpu.memory_space<vmem>>, %arg5: memref<8x32xf32, #tpu.memory_space<vmem>>, %arg6: memref<8x8xf32, #tpu.memory_space<vmem>>) attributes {dimension_semantics = [#tpu.dimension_semantics<parallel>], iteration_bounds = array<i64: 1>, scalar_prefetch = 0 : i64, scratch_operands = 0 : i64, tpu.core_type = #tpu.core_type<tc>, window_params = [{transform_indices = @transform_0, window_bounds = array<i64: 8, 8, 32>}, {pipeline_mode = #tpu.pipeline_mode<synchronous>, transform_indices = @transform_1, window_bounds = array<i64: 32, 32>}, {pipeline_mode = #tpu.pipeline_mode<synchronous>, transform_indices = @transform_2, window_bounds = array<i64: 1, 32>}, {pipeline_mode = #tpu.pipeline_mode<synchronous>, transform_indices = @transform_3, window_bounds = array<i64: 1, 32>}, {transform_indices = @transform_4, window_bounds = array<i64: 8, 32>}, {transform_indices = @transform_5, window_bounds = array<i64: 8, 8>}]} {
    %c0 = arith.constant 0 : index
    %c0_0 = arith.constant 0 : index
    %c0_1 = arith.constant 0 : index
    %0 = vector.load %arg1[%c0, %c0_0, %c0_1] : memref<8x8x32xf32, #tpu.memory_space<vmem>>, vector<8x8x32xf32>
    %c0_2 = arith.constant 0 : index
    %c0_3 = arith.constant 0 : index
    %1 = vector.load %arg2[%c0_2, %c0_3] : memref<32x32xf32, #tpu.memory_space<vmem>>, vector<32x32xf32>
    %cst = arith.constant dense<0.000000e+00> : vector<8x8x32xf32>
    %2 = tpu.matmul %0, %1, %cst {dimension_numbers = #tpu.dot_dimension_numbers<[2], [0], [0, 1], [1], [0, 0, 0, 1, 1, 1], [], []>} : vector<8x8x32xf32>, vector<32x32xf32>, vector<8x8x32xf32> -> vector<8x8x32xf32>
    %c0_4 = arith.constant 0 : index
    %c0_5 = arith.constant 0 : index
    %3 = vector.load %arg3[%c0_4, %c0_5] : memref<1x32xf32, #tpu.memory_space<vmem>>, vector<1x32xf32>
    %4 = vector.shape_cast %3 : vector<1x32xf32> to vector<1x1x32xf32>
    %5 = vector.broadcast %4 : vector<1x1x32xf32> to vector<8x8x32xf32>
    %6 = arith.addf %2, %5 : vector<8x8x32xf32>
    %cst_6 = arith.constant 0.000000e+00 : f32
    %7 = vector.broadcast %cst_6 : f32 to vector<8x8x32xf32>
    %8 = arith.maximumf %6, %7 : vector<8x8x32xf32>
    %c0_7 = arith.constant 0 : index
    %c0_8 = arith.constant 0 : index
    %9 = vector.load %arg4[%c0_7, %c0_8] : memref<1x32xf32, #tpu.memory_space<vmem>>, vector<1x32xf32>
    %10 = vector.shape_cast %9 : vector<1x32xf32> to vector<1x1x32xf32>
    %11 = vector.broadcast %10 : vector<1x1x32xf32> to vector<8x8x32xf32>
    %12 = arith.mulf %8, %11 : vector<8x8x32xf32>
    %cst_9 = arith.constant dense<0.000000e+00> : vector<8x8xf32>
    %13 = vector.multi_reduction <add>, %12, %cst_9 [2] : vector<8x8x32xf32> to vector<8x8xf32>
    %cst_10 = arith.constant dense<0xFF800000> : vector<8xf32>
    %14 = vector.multi_reduction <maximumf>, %13, %cst_10 [1] : vector<8x8xf32> to vector<8xf32>
    %15 = vector.shape_cast %14 : vector<8xf32> to vector<8x1xf32>
    %16 = vector.broadcast %15 : vector<8x1xf32> to vector<8x8xf32>
    %17 = arith.subf %13, %16 : vector<8x8xf32>
    %18 = math.exp %17 : vector<8x8xf32>
    %cst_11 = arith.constant dense<0.000000e+00> : vector<8xf32>
    %19 = vector.multi_reduction <add>, %18, %cst_11 [1] : vector<8x8xf32> to vector<8xf32>
    %20 = vector.shape_cast %19 : vector<8xf32> to vector<8x1xf32>
    %21 = vector.broadcast %20 : vector<8x1xf32> to vector<8x8xf32>
    %22 = arith.divf %18, %21 : vector<8x8xf32>
    %c0_12 = arith.constant 0 : index
    %c0_13 = arith.constant 0 : index
    %23 = vector.load %arg6[%c0_12, %c0_13] : memref<8x8xf32, #tpu.memory_space<vmem>>, vector<8x8xf32>
    tpu.vector_store %arg6[%c0_12, %c0_13], %22 {strides = array<i32>} : memref<8x8xf32, #tpu.memory_space<vmem>>, vector<8x8xf32>,
    %24 = vector.shape_cast %22 : vector<8x8xf32> to vector<8x8x1xf32>
    %25 = vector.broadcast %24 : vector<8x8x1xf32> to vector<8x8x32xf32>
    %26 = arith.mulf %0, %25 : vector<8x8x32xf32>
    %cst_14 = arith.constant dense<0.000000e+00> : vector<8x32xf32>
    %27 = vector.multi_reduction <add>, %26, %cst_14 [1] : vector<8x8x32xf32> to vector<8x32xf32>
    %c0_15 = arith.constant 0 : index
    %c0_16 = arith.constant 0 : index
    %28 = vector.load %arg5[%c0_15, %c0_16] : memref<8x32xf32, #tpu.memory_space<vmem>>, vector<8x32xf32>
    tpu.vector_store %arg5[%c0_15, %c0_16], %27 {strides = array<i32>} : memref<8x32xf32, #tpu.memory_space<vmem>>, vector<8x32xf32>,
    return
  }
  func.func @transform_0(%arg0: i32) -> (i32, i32, i32) {
    %c0_i32 = arith.constant 0 : i32
    %c0_i32_0 = arith.constant 0 : i32
    %c0_i32_1 = arith.constant 0 : i32
    return %arg0, %c0_i32, %c0_i32_0 : i32, i32, i32
  }
  func.func @transform_1(%arg0: i32) -> (i32, i32) {
    %c0_i32 = arith.constant 0 : i32
    %c0_i32_0 = arith.constant 0 : i32
    %c0_i32_1 = arith.constant 0 : i32
    return %c0_i32, %c0_i32_0 : i32, i32
  }
  func.func @transform_2(%arg0: i32) -> (i32, i32) {
    %c0_i32 = arith.constant 0 : i32
    %c0_i32_0 = arith.constant 0 : i32
    %c0_i32_1 = arith.constant 0 : i32
    return %c0_i32, %c0_i32_0 : i32, i32
  }
  func.func @transform_3(%arg0: i32) -> (i32, i32) {
    %c0_i32 = arith.constant 0 : i32
    %c0_i32_0 = arith.constant 0 : i32
    %c0_i32_1 = arith.constant 0 : i32
    return %c0_i32, %c0_i32_0 : i32, i32
  }
  func.func @transform_4(%arg0: i32) -> (i32, i32) {
    %c0_i32 = arith.constant 0 : i32
    %c0_i32_0 = arith.constant 0 : i32
    return %arg0, %c0_i32 : i32, i32
  }
  func.func @transform_5(%arg0: i32) -> (i32, i32) {
    %c0_i32 = arith.constant 0 : i32
    %c0_i32_0 = arith.constant 0 : i32
    return %arg0, %c0_i32 : i32, i32
  }
}

</mosaic_0001>

<llo_original>
// kernel: tpu_custom_call.1
$region0: #{tpu_custom_call.1}
  #allocation0 [shape = 'u32[]', space=smem, size = 0x4, offset = 0x4, fixed_abs, tag = 'smem constant byte address 0x4 - core index']
  #allocation1 [shape = 'u32[144,128]{1,0:T(1,128)}', space=vmem, size = 0x12000, scoped, tag = 'internal scratch']
  %s0 = inlined_call_operand.hbm [shape: f32[8,8,32], index: 0, kind: input, shape index: {}]
  %s1 = inlined_call_operand.hbm [shape: f32[32,32], index: 1, kind: input, shape index: {}]
  %s2 = inlined_call_operand.vmem [shape: f32[1,32], index: 2, kind: input, shape index: {}]
  %s3 = inlined_call_operand.vmem [shape: f32[1,32], index: 3, kind: input, shape index: {}]
  %s4 = inlined_call_operand.hbm [shape: f32[8,32], index: 4, kind: output, shape index: {0}]
  %s5 = inlined_call_operand.hbm [shape: f32[8,8], index: 5, kind: output, shape index: {1}]
  %6 = xla_tuple %s4, %s5
  %s7 = sld [smem:[#allocation0]]
  $region42: #{tpu_custom_call.1} parent=0
    _
  %s9 = ssub.s32 1, %s7
  %s10 = scalar_select 0, %s9, %s7
  $region1: #{tpu_custom_call.1} parent=0
    #allocation2 [shape = 'u8[32768]{0}', space=vmem, size = 0x8000, scoped, tag = 'input window, operand 0, single buffered']
    #allocation3 [shape = 's32[1]{0}', space=sflag, size = 0x4, scoped, tag = 'scoped memory for tpu_custom_call.1']
    #allocation4 [shape = 's32[1]{0}', space=sflag, size = 0x4, scoped, tag = 'scoped memory for tpu_custom_call.1']
    #allocation5 [shape = 'u8[16384]{0}', space=vmem, size = 0x4000, scoped, tag = 'input window, operand 1, single buffered']
    #allocation6 [shape = 's32[1]{0}', space=sflag, size = 0x4, scoped, tag = 'scoped memory for tpu_custom_call.1']
    #allocation7 [shape = 'u8[4096]{0}', space=vmem, size = 0x1000, scoped, tag = 'output window, operand 0, single buffered']
    #allocation8 [shape = 'u8[4096]{0}', space=vmem, size = 0x1000, scoped, tag = 'output window, operand 1, single buffered']
    #allocation9 [shape = 's32[1]{0}', space=sflag, size = 0x4, scoped, tag = 'scoped memory for tpu_custom_call.1']
    %11 = vsyncpa [#allocation3], 0
    %12 = vsyncpa [#allocation6], 0
    %13 = vsyncpa [#allocation4], 0
    %14 = vsyncpa [#allocation9], 0
    // Predicated region
    $region2: #{tpu_custom_call.1} parent=1 // pred_check
      _
    $region3: #{tpu_custom_call.1} parent=1 // pred_check_branch
      %16 = sbr.rel (0) target = $region5
    $region4: #{tpu_custom_call.1} parent=1 // pred_region
      %s18 = ssub.s32 1024, 1024
      %19 = vsyncadd [#allocation3], %s18
      %s20 = sshll.u32 [#allocation2], 4
      %s21 = int_to_ptr.vmem [resolvable:$true] %s20
      %26 = dma.hbm_to_vmem [thread:$0]  %s0, 1024, %s21, [#allocation3], 128, 128, 8
    $region5: #{tpu_custom_call.1} parent=1 // pred_fallthru
      _
    // Predicated region
    $region6: #{tpu_custom_call.1} parent=1 // pred_check
      _
    $region7: #{tpu_custom_call.1} parent=1 // pred_check_branch
      %28 = sbr.rel (0) target = $region9
    $region8: #{tpu_custom_call.1} parent=1 // pred_region
      %s30 = ssub.s32 512, 512
      %31 = vsyncadd [#allocation6], %s30
      %s32 = sshll.u32 [#allocation5], 4
      %s33 = int_to_ptr.vmem [resolvable:$true] %s32
      %38 = dma.hbm_to_vmem [thread:$0]  %s1, 512, %s33, [#allocation6], 128, 128, 8
    $region9: #{tpu_custom_call.1} parent=1 // pred_fallthru
      _
    // Predicated region
    $region10: #{tpu_custom_call.1} parent=1 // pred_check
      _
    $region11: #{tpu_custom_call.1} parent=1 // pred_check_branch
      %40 = sbr.rel (0) target = $region13
    $region12: #{tpu_custom_call.1} parent=1 // pred_region
      _
    $region13: #{tpu_custom_call.1} parent=1 // pred_fallthru
      _
    // Predicated region
    $region14: #{tpu_custom_call.1} parent=1 // pred_check
      _
    $region15: #{tpu_custom_call.1} parent=1 // pred_check_branch
      %42 = sbr.rel (0) target = $region17
    $region16: #{tpu_custom_call.1} parent=1 // pred_region
      _
    $region17: #{tpu_custom_call.1} parent=1 // pred_fallthru
      _
    // Predicated region
    $region18: #{tpu_custom_call.1} parent=1 // pred_check
      _
    $region19: #{tpu_custom_call.1} parent=1 // pred_check_branch
      %44 = sbr.rel (0) target = $region21
    $region20: #{tpu_custom_call.1} parent=1 // pred_region
      %45 = dma.done [#allocation3], 1024
    $region21: #{tpu_custom_call.1} parent=1 // pred_fallthru
      _
    // Predicated region
    $region22: #{tpu_custom_call.1} parent=1 // pred_check
      _
    $region23: #{tpu_custom_call.1} parent=1 // pred_check_branch
      %47 = sbr.rel (0) target = $region25
    $region24: #{tpu_custom_call.1} parent=1 // pred_region
      %48 = dma.done [#allocation6], 512
    $region25: #{tpu_custom_call.1} parent=1 // pred_fallthru
      _
    %v49 = vld [vmem:[#allocation2] sm:$0xff]
    %v50 = vld [vmem:[#allocation2 + $0x8] sm:$0xff]
    %v51 = vld [vmem:[#allocation2 + $0x10] sm:$0xff]
    %v52 = vld [vmem:[#allocation2 + $0x18] sm:$0xff]
    %v53 = vld [vmem:[#allocation2 + $0x20] sm:$0xff]
    %v54 = vld [vmem:[#allocation2 + $0x28] sm:$0xff]
    %v55 = vld [vmem:[#allocation2 + $0x30] sm:$0xff]
    %v56 = vld [vmem:[#allocation2 + $0x38] sm:$0xff]
    %v57 = vld [vmem:[#allocation5] sm:$0xff]
    %v58 = vld [vmem:[#allocation5 + $0x8] sm:$0xff]
    %v59 = vld [vmem:[#allocation5 + $0x10] sm:$0xff]
    %v60 = vld [vmem:[#allocation5 + $0x18] sm:$0xff]
    %v61 = vld [vmem:[%s2] sm:$0x1]
    %v63 = vlaneseq
    %v64 = vshrl.u32 %v63, 7
    %v65 = vsub.s32 0, %v64
    %v66 = vrot.slane %v61, %v65
    %vm68 = vcmask 261120
    %v70 = vsel %vm68, %v49, 0
    %v73 = vsel %vm68, %v50, 0
    %v76 = vsel %vm68, %v51, 0
    %v79 = vsel %vm68, %v52, 0
    %v82 = vsel %vm68, %v53, 0
    %v85 = vsel %vm68, %v54, 0
    %v88 = vsel %vm68, %v55, 0
    %v91 = vsel %vm68, %v56, 0
    %93 = vmatprep.subr.mxu0 0.0
    %94 = vmatpush1.msra.mxu0 %v57
    %95 = vmatprep.subr.mxu0 0.0
    %96 = vmatpush1.msra.mxu0 %v58
    %97 = vmatprep.subr.mxu0 0.0
    %98 = vmatpush1.msra.mxu0 %v59
    %99 = vmatprep.subr.mxu0 0.0
    %100 = vmatpush1.msra.mxu0 %v60
    %101 = vmatprep.subr.mxu0 0.0
    %102 = vmatpush1.msra.mxu0 0.0
    %103 = vmatprep.subr.mxu0 0.0
    %104 = vmatpush1.msra.mxu0 0.0
    %105 = vmatprep.subr.mxu0 0.0
    %106 = vmatpush1.msra.mxu0 0.0
    %107 = vmatprep.subr.mxu0 0.0
    %108 = vmatpush1.msra.mxu0 0.0
    %109 = vmatprep.subr.mxu0 0.0
    %110 = vmatpush1.msra.mxu0 0.0
    %111 = vmatprep.subr.mxu0 0.0
    %112 = vmatpush1.msra.mxu0 0.0
    %113 = vmatprep.subr.mxu0 0.0
    %114 = vmatpush1.msra.mxu0 0.0
    %115 = vmatprep.subr.mxu0 0.0
    %116 = vmatpush1.msra.mxu0 0.0
    %117 = vmatprep.subr.mxu0 0.0
    %118 = vmatpush1.msra.mxu0 0.0
    %119 = vmatprep.subr.mxu0 0.0
    %120 = vmatpush1.msra.mxu0 0.0
    %121 = vmatprep.subr.mxu0 0.0
    %122 = vmatpush1.msra.mxu0 0.0
    %123 = vmatprep.subr.mxu0 0.0
    %124 = vmatpush1.msra.mxu0 0.0
    %125 = vmatprep.subr.mxu0 0.0
    %126 = vmatpush1.msra.mxu0 0.0
    %127 = vmatprep.subr.mxu0 0.0
    %128 = vmatpush1.msra.mxu0 0.0
    %129 = vmatprep.subr.mxu0 0.0
    %130 = vmatpush1.msra.mxu0 0.0
    %131 = vmatprep.subr.mxu0 0.0
    %132 = vmatpush1.msra.mxu0 0.0
    %133 = vmatprep.subr.mxu0 0.0
    %134 = vmatpush1.msra.mxu0 0.0
    %135 = vmatprep.subr.mxu0 0.0
    %136 = vmatpush1.msra.mxu0 0.0
    %137 = vmatprep.subr.mxu0 0.0
    %138 = vmatpush1.msra.mxu0 0.0
    %139 = vmatprep.subr.mxu0 0.0
    %140 = vmatpush1.msra.mxu0 0.0
    %141 = vmatprep.subr.mxu0 0.0
    %142 = vmatpush1.msra.mxu0 0.0
    %143 = vmatprep.subr.mxu0 0.0
    %144 = vmatpush1.msra.mxu0 0.0
    %145 = vmatprep.subr.mxu0 0.0
    %146 = vmatpush1.msra.mxu0 0.0
    %147 = vmatprep.subr.mxu0 0.0
    %148 = vmatpush1.msra.mxu0 0.0
    %149 = vmatprep.subr.mxu0 0.0
    %150 = vmatpush1.msra.mxu0 0.0
    %151 = vmatprep.subr.mxu0 0.0
    %152 = vmatpush1.msra.mxu0 0.0
    %153 = vmatprep.subr.mxu0 0.0
    %154 = vmatpush1.msra.mxu0 0.0
    %155 = vmatprep.subr.mxu0 0.0
    %156 = vmatpush1.msra.mxu0 0.0
    %157 = vmatprep.mubr.f32.mxu0 0.0
    %158 = vmatmul.mubr.f32.gmra.mrb[0].mxu0 %v70
    %v159 = vpop.f32.mrb[0].mxu0
    %v160 = vadd.f32 %v66, %v159
    %v161 = vpop.f32.mrb[0].mxu0
    %162 = vmatprep.mubr.f32.mxu0 0.0
    %163 = vmatmul.mubr.f32.gmra.mrb[0].mxu0 %v73
    %v164 = vpop.f32.mrb[0].mxu0
    %v165 = vadd.f32 %v66, %v164
    %v166 = vpop.f32.mrb[0].mxu0
    %167 = vmatprep.mubr.f32.mxu0 0.0
    %168 = vmatmul.mubr.f32.gmra.mrb[0].mxu0 %v76
    %v169 = vpop.f32.mrb[0].mxu0
    %v170 = vadd.f32 %v66, %v169
    %v171 = vpop.f32.mrb[0].mxu0
    %172 = vmatprep.mubr.f32.mxu0 0.0
    %173 = vmatmul.mubr.f32.gmra.mrb[0].mxu0 %v79
    %v174 = vpop.f32.mrb[0].mxu0
    %v175 = vadd.f32 %v66, %v174
    %v176 = vpop.f32.mrb[0].mxu0
    %177 = vmatprep.mubr.f32.mxu0 0.0
    %178 = vmatmul.mubr.f32.gmra.mrb[0].mxu0 %v82
    %v179 = vpop.f32.mrb[0].mxu0
    %v180 = vadd.f32 %v66, %v179
    %v181 = vpop.f32.mrb[0].mxu0
    %182 = vmatprep.mubr.f32.mxu0 0.0
    %183 = vmatmul.mubr.f32.gmra.mrb[0].mxu0 %v85
    %v184 = vpop.f32.mrb[0].mxu0
    %v185 = vadd.f32 %v66, %v184
    %v186 = vpop.f32.mrb[0].mxu0
    %187 = vmatprep.mubr.f32.mxu0 0.0
    %188 = vmatmul.mubr.f32.gmra.mrb[0].mxu0 %v88
    %v189 = vpop.f32.mrb[0].mxu0
    %v190 = vadd.f32 %v66, %v189
    %v191 = vpop.f32.mrb[0].mxu0
    %192 = vmatprep.mubr.f32.mxu0 0.0
    %193 = vmatmul.mubr.f32.gmra.mrb[0].mxu0 %v91
    %v194 = vpop.f32.mrb[0].mxu0
    %v195 = vadd.f32 %v66, %v194
    %v196 = vpop.f32.mrb[0].mxu0
    %197 = vdwg.mxu0
    %v198 = vmax.f32 %v160, 0.0
    %v199 = vmax.f32 %v165, 0.0
    %v200 = vmax.f32 %v170, 0.0
    %v201 = vmax.f32 %v175, 0.0
    %v202 = vmax.f32 %v180, 0.0
    %v203 = vmax.f32 %v185, 0.0
    %v204 = vmax.f32 %v190, 0.0
    %v205 = vmax.f32 %v195, 0.0
    %v206 = vld [vmem:[%s3] sm:$0x1]
    %v208 = vlaneseq
    %v209 = vshrl.u32 %v208, 7
    %v210 = vsub.s32 0, %v209
    %v211 = vrot.slane %v206, %v210
    %v213 = vmul.f32 %v198, %v211
    %v214 = vmul.f32 %v199, %v211
    %v215 = vmul.f32 %v200, %v211
    %v216 = vmul.f32 %v201, %v211
    %v217 = vmul.f32 %v202, %v211
    %v218 = vmul.f32 %v203, %v211
    %v219 = vmul.f32 %v204, %v211
    %v220 = vmul.f32 %v205, %v211
    %v221 = vsel %vm68, %v213, 0.0
    %222 = vadd.xlane.f32.xlu0 %v221
    %v223 = vpop.xlane.xlu0 %222
    %v224 = vsel %vm68, %v214, 0.0
    %225 = vadd.xlane.f32.xlu0 %v224
    %v226 = vpop.xlane.xlu0 %225
    %v227 = vsel %vm68, %v215, 0.0
    %228 = vadd.xlane.f32.xlu0 %v227
    %v229 = vpop.xlane.xlu0 %228
    %v230 = vsel %vm68, %v216, 0.0
    %231 = vadd.xlane.f32.xlu0 %v230
    %v232 = vpop.xlane.xlu0 %231
    %v233 = vsel %vm68, %v217, 0.0
    %234 = vadd.xlane.f32.xlu0 %v233
    %v235 = vpop.xlane.xlu0 %234
    %v236 = vsel %vm68, %v218, 0.0
    %237 = vadd.xlane.f32.xlu0 %v236
    %v238 = vpop.xlane.xlu0 %237
    %v239 = vsel %vm68, %v219, 0.0
    %240 = vadd.xlane.f32.xlu0 %v239
    %v241 = vpop.xlane.xlu0 %240
    %v242 = vsel %vm68, %v220, 0.0
    %243 = vadd.xlane.f32.xlu0 %v242
    %v244 = vpop.xlane.xlu0 %243
    %v253 = vlaneseq
    %v254 = vand.u32 %v253, 127
    %v255 = vlaneseq
    %v256 = vshrl.u32 %v255, 7
    %v257 = vsub.s32 %v254, %v256
    %v258 = vrot.slane %v223, %v257
    %v259 = vlaneseq
    %v260 = vshrl.u32 %v259, 7
    %v261 = vsub.s32 %v254, %v260
    %v262 = vrot.slane %v226, %v261
    %v263 = vlaneseq
    %v264 = vshrl.u32 %v263, 7
    %v265 = vsub.s32 %v254, %v264
    %v266 = vrot.slane %v229, %v265
    %v267 = vlaneseq
    %v268 = vshrl.u32 %v267, 7
    %v269 = vsub.s32 %v254, %v268
    %v270 = vrot.slane %v232, %v269
    %v271 = vlaneseq
    %v272 = vshrl.u32 %v271, 7
    %v273 = vsub.s32 %v254, %v272
    %v274 = vrot.slane %v235, %v273
    %v275 = vlaneseq
    %v276 = vshrl.u32 %v275, 7
    %v277 = vsub.s32 %v254, %v276
    %v278 = vrot.slane %v238, %v277
    %v279 = vlaneseq
    %v280 = vshrl.u32 %v279, 7
    %v281 = vsub.s32 %v254, %v280
    %v282 = vrot.slane %v241, %v281
    %v283 = vlaneseq
    %v284 = vshrl.u32 %v283, 7
    %v285 = vsub.s32 %v254, %v284
    %v286 = vrot.slane %v244, %v285
    %vm287 = vcmask 1041409
    %v288 = vsel %vm287, %v262, %v258
    %vm289 = vcmask 1042434
    %v290 = vsel %vm289, %v266, %v288
    %vm291 = vcmask 1043459
    %v292 = vsel %vm291, %v270, %v290
    %vm293 = vcmask 1044484
    %v294 = vsel %vm293, %v274, %v292
    %vm295 = vcmask 1045509
    %v296 = vsel %vm295, %v278, %v294
    %vm297 = vcmask 1046534
    %v298 = vsel %vm297, %v282, %v296
    %vm299 = vcmask 1047559
    %v300 = vsel %vm299, %v286, %v298
    %vm302 = vcmask 64512
    %v303 = vsel %vm302, %v300, -inf
    %304 = vmax.xlane.f32.xlu0 %v303
    %v305 = vpop.xlane.xlu0 %304
    %v307 = vlaneseq
    %v308 = vshrl.u32 %v307, 7
    %v309 = vsub.s32 0, %v308
    %v310 = vrot.slane %v305, %v309
    %v311 = vlaneseq
    %v312 = vshrl.u32 %v311, 7
    %v313 = vsub.s32 1, %v312
    %v314 = vrot.slane %v305, %v313
    %v315 = vlaneseq
    %v316 = vshrl.u32 %v315, 7
    %v317 = vsub.s32 2, %v316
    %v318 = vrot.slane %v305, %v317
    %v319 = vlaneseq
    %v320 = vshrl.u32 %v319, 7
    %v321 = vsub.s32 3, %v320
    %v322 = vrot.slane %v305, %v321
    %v323 = vlaneseq
    %v324 = vshrl.u32 %v323, 7
    %v325 = vsub.s32 4, %v324
    %v326 = vrot.slane %v305, %v325
    %v327 = vlaneseq
    %v328 = vshrl.u32 %v327, 7
    %v329 = vsub.s32 5, %v328
    %v330 = vrot.slane %v305, %v329
    %v331 = vlaneseq
    %v332 = vshrl.u32 %v331, 7
    %v333 = vsub.s32 6, %v332
    %v334 = vrot.slane %v305, %v333
    %v335 = vlaneseq
    %v336 = vshrl.u32 %v335, 7
    %v337 = vsub.s32 7, %v336
    %v338 = vrot.slane %v305, %v337
    %v347 = vsub.f32 %v223, %v310
    %v348 = vsub.f32 %v226, %v314
    %v349 = vsub.f32 %v229, %v318
    %v350 = vsub.f32 %v232, %v322
    %v351 = vsub.f32 %v235, %v326
    %v352 = vsub.f32 %v238, %v330
    %v353 = vsub.f32 %v241, %v334
    %v354 = vsub.f32 %v244, %v338
    %v355 = vmul.f32 %v347, 1.442695
    %v356 = vpow.pop %v355
    %v357 = vmul.f32 %v348, 1.442695
    %v358 = vpow.pop %v357
    %v359 = vmul.f32 %v349, 1.442695
    %v360 = vpow.pop %v359
    %v361 = vmul.f32 %v350, 1.442695
    %v362 = vpow.pop %v361
    %v363 = vmul.f32 %v351, 1.442695
    %v364 = vpow.pop %v363
    %v365 = vmul.f32 %v352, 1.442695
    %v366 = vpow.pop %v365
    %v367 = vmul.f32 %v353, 1.442695
    %v368 = vpow.pop %v367
    %v369 = vmul.f32 %v354, 1.442695
    %v370 = vpow.pop %v369
    %379 = vset.pattern.permute.xlu0 0
    %380 = vperm.xlu0 %379, %v356
    %v381 = vpop.permute.xlu0 %380
    %382 = vset.pattern.permute.xlu0 0
    %383 = vperm.xlu0 %382, %v358
    %v384 = vpop.permute.xlu0 %383
    %385 = vset.pattern.permute.xlu0 0
    %386 = vperm.xlu0 %385, %v360
    %v387 = vpop.permute.xlu0 %386
    %388 = vset.pattern.permute.xlu0 0
    %389 = vperm.xlu0 %388, %v362
    %v390 = vpop.permute.xlu0 %389
    %391 = vset.pattern.permute.xlu0 0
    %392 = vperm.xlu0 %391, %v364
    %v393 = vpop.permute.xlu0 %392
    %394 = vset.pattern.permute.xlu0 0
    %395 = vperm.xlu0 %394, %v366
    %v396 = vpop.permute.xlu0 %395
    %397 = vset.pattern.permute.xlu0 0
    %398 = vperm.xlu0 %397, %v368
    %v399 = vpop.permute.xlu0 %398
    %400 = vset.pattern.permute.xlu0 0
    %401 = vperm.xlu0 %400, %v370
    %v402 = vpop.permute.xlu0 %401
    %v403 = vlaneseq
    %v404 = vshrl.u32 %v403, 7
    %v405 = vsub.s32 %v254, %v404
    %v406 = vrot.slane %v381, %v405
    %v407 = vlaneseq
    %v408 = vshrl.u32 %v407, 7
    %v409 = vsub.s32 %v254, %v408
    %v410 = vrot.slane %v384, %v409
    %v411 = vlaneseq
    %v412 = vshrl.u32 %v411, 7
    %v413 = vsub.s32 %v254, %v412
    %v414 = vrot.slane %v387, %v413
    %v415 = vlaneseq
    %v416 = vshrl.u32 %v415, 7
    %v417 = vsub.s32 %v254, %v416
    %v418 = vrot.slane %v390, %v417
    %v419 = vlaneseq
    %v420 = vshrl.u32 %v419, 7
    %v421 = vsub.s32 %v254, %v420
    %v422 = vrot.slane %v393, %v421
    %v423 = vlaneseq
    %v424 = vshrl.u32 %v423, 7
    %v425 = vsub.s32 %v254, %v424
    %v426 = vrot.slane %v396, %v425
    %v427 = vlaneseq
    %v428 = vshrl.u32 %v427, 7
    %v429 = vsub.s32 %v254, %v428
    %v430 = vrot.slane %v399, %v429
    %v431 = vlaneseq
    %v432 = vshrl.u32 %v431, 7
    %v433 = vsub.s32 %v254, %v432
    %v434 = vrot.slane %v402, %v433
    %v435 = vsel %vm287, %v410, %v406
    %v436 = vsel %vm289, %v414, %v435
    %v437 = vsel %vm291, %v418, %v436
    %v438 = vsel %vm293, %v422, %v437
    %v439 = vsel %vm295, %v426, %v438
    %v440 = vsel %vm297, %v430, %v439
    %v441 = vsel %vm299, %v434, %v440
    %v443 = vsel %vm302, %v441, 0.0
    %444 = vadd.xlane.f32.xlu0 %v443
    %v445 = vpop.xlane.xlu0 %444
    %v447 = vlaneseq
    %v448 = vshrl.u32 %v447, 7
    %v449 = vsub.s32 0, %v448
    %v450 = vrot.slane %v445, %v449
    %v451 = vlaneseq
    %v452 = vshrl.u32 %v451, 7
    %v453 = vsub.s32 1, %v452
    %v454 = vrot.slane %v445, %v453
    %v455 = vlaneseq
    %v456 = vshrl.u32 %v455, 7
    %v457 = vsub.s32 2, %v456
    %v458 = vrot.slane %v445, %v457
    %v459 = vlaneseq
    %v460 = vshrl.u32 %v459, 7
    %v461 = vsub.s32 3, %v460
    %v462 = vrot.slane %v445, %v461
    %v463 = vlaneseq
    %v464 = vshrl.u32 %v463, 7
    %v465 = vsub.s32 4, %v464
    %v466 = vrot.slane %v445, %v465
    %v467 = vlaneseq
    %v468 = vshrl.u32 %v467, 7
    %v469 = vsub.s32 5, %v468
    %v470 = vrot.slane %v445, %v469
    %v471 = vlaneseq
    %v472 = vshrl.u32 %v471, 7
    %v473 = vsub.s32 6, %v472
    %v474 = vrot.slane %v445, %v473
    %v475 = vlaneseq
    %v476 = vshrl.u32 %v475, 7
    %v477 = vsub.s32 7, %v476
    %v478 = vrot.slane %v445, %v477
    %v487 = vrcp.pop %v450
    %v488 = vmul.f32 %v356, %v487
    %v489 = vrcp.pop %v454
    %v490 = vmul.f32 %v358, %v489
    %v491 = vrcp.pop %v458
    %v492 = vmul.f32 %v360, %v491
    %v493 = vrcp.pop %v462
    %v494 = vmul.f32 %v362, %v493
    %v495 = vrcp.pop %v466
    %v496 = vmul.f32 %v364, %v495
    %v497 = vrcp.pop %v470
    %v498 = vmul.f32 %v366, %v497
    %v499 = vrcp.pop %v474
    %v500 = vmul.f32 %v368, %v499
    %v501 = vrcp.pop %v478
    %v502 = vmul.f32 %v370, %v501
    %511 = vset.pattern.permute.xlu0 0
    %512 = vperm.xlu0 %511, %v488
    %v513 = vpop.permute.xlu0 %512
    %514 = vset.pattern.permute.xlu0 0
    %515 = vperm.xlu0 %514, %v490
    %v516 = vpop.permute.xlu0 %515
    %517 = vset.pattern.permute.xlu0 0
    %518 = vperm.xlu0 %517, %v492
    %v519 = vpop.permute.xlu0 %518
    %520 = vset.pattern.permute.xlu0 0
    %521 = vperm.xlu0 %520, %v494
    %v522 = vpop.permute.xlu0 %521
    %523 = vset.pattern.permute.xlu0 0
    %524 = vperm.xlu0 %523, %v496
    %v525 = vpop.permute.xlu0 %524
    %526 = vset.pattern.permute.xlu0 0
    %527 = vperm.xlu0 %526, %v498
    %v528 = vpop.permute.xlu0 %527
    %529 = vset.pattern.permute.xlu0 0
    %530 = vperm.xlu0 %529, %v500
    %v531 = vpop.permute.xlu0 %530
    %532 = vset.pattern.permute.xlu0 0
    %533 = vperm.xlu0 %532, %v502
    %v534 = vpop.permute.xlu0 %533
    %v535 = vlaneseq
    %v536 = vshrl.u32 %v535, 7
    %v537 = vsub.s32 %v254, %v536
    %v538 = vrot.slane %v513, %v537
    %v539 = vlaneseq
    %v540 = vshrl.u32 %v539, 7
    %v541 = vsub.s32 %v254, %v540
    %v542 = vrot.slane %v516, %v541
    %v543 = vlaneseq
    %v544 = vshrl.u32 %v543, 7
    %v545 = vsub.s32 %v254, %v544
    %v546 = vrot.slane %v519, %v545
    %v547 = vlaneseq
    %v548 = vshrl.u32 %v547, 7
    %v549 = vsub.s32 %v254, %v548
    %v550 = vrot.slane %v522, %v549
    %v551 = vlaneseq
    %v552 = vshrl.u32 %v551, 7
    %v553 = vsub.s32 %v254, %v552
    %v554 = vrot.slane %v525, %v553
    %v555 = vlaneseq
    %v556 = vshrl.u32 %v555, 7
    %v557 = vsub.s32 %v254, %v556
    %v558 = vrot.slane %v528, %v557
    %v559 = vlaneseq
    %v560 = vshrl.u32 %v559, 7
    %v561 = vsub.s32 %v254, %v560
    %v562 = vrot.slane %v531, %v561
    %v563 = vlaneseq
    %v564 = vshrl.u32 %v563, 7
    %v565 = vsub.s32 %v254, %v564
    %v566 = vrot.slane %v534, %v565
    %v567 = vsel %vm287, %v542, %v538
    %v568 = vsel %vm289, %v546, %v567
    %v569 = vsel %vm291, %v550, %v568
    %v570 = vsel %vm293, %v554, %v569
    %v571 = vsel %vm295, %v558, %v570
    %v572 = vsel %vm297, %v562, %v571
    %v573 = vsel %vm299, %v566, %v572
    %575 = vst.msk [vmem:[#allocation8] sm:$0xff] %vm302, %v573
    %v584 = vmul.f32 %v49, %v513
    %v585 = vmul.f32 %v50, %v516
    %v586 = vmul.f32 %v51, %v519
    %v587 = vmul.f32 %v52, %v522
    %v588 = vmul.f32 %v53, %v525
    %v589 = vmul.f32 %v54, %v528
    %v590 = vmul.f32 %v55, %v531
    %v591 = vmul.f32 %v56, %v534
    %v592 = vsel %vm68, %v584, 0.0
    %v593 = vrot.slane %v592, 4
    %v594 = vadd.f32 %v592, %v593
    %v595 = vrot.slane %v594, 2
    %v596 = vadd.f32 %v594, %v595
    %v597 = vrot.slane %v596, 1
    %v598 = vadd.f32 %v596, %v597
    %v599 = vsel %vm68, %v585, 0.0
    %v600 = vrot.slane %v599, 4
    %v601 = vadd.f32 %v599, %v600
    %v602 = vrot.slane %v601, 2
    %v603 = vadd.f32 %v601, %v602
    %v604 = vrot.slane %v603, 1
    %v605 = vadd.f32 %v603, %v604
    %v606 = vsel %vm68, %v586, 0.0
    %v607 = vrot.slane %v606, 4
    %v608 = vadd.f32 %v606, %v607
    %v609 = vrot.slane %v608, 2
    %v610 = vadd.f32 %v608, %v609
    %v611 = vrot.slane %v610, 1
    %v612 = vadd.f32 %v610, %v611
    %v613 = vsel %vm68, %v587, 0.0
    %v614 = vrot.slane %v613, 4
    %v615 = vadd.f32 %v613, %v614
    %v616 = vrot.slane %v615, 2
    %v617 = vadd.f32 %v615, %v616
    %v618 = vrot.slane %v617, 1
    %v619 = vadd.f32 %v617, %v618
    %v620 = vsel %vm68, %v588, 0.0
    %v621 = vrot.slane %v620, 4
    %v622 = vadd.f32 %v620, %v621
    %v623 = vrot.slane %v622, 2
    %v624 = vadd.f32 %v622, %v623
    %v625 = vrot.slane %v624, 1
    %v626 = vadd.f32 %v624, %v625
    %v627 = vsel %vm68, %v589, 0.0
    %v628 = vrot.slane %v627, 4
    %v629 = vadd.f32 %v627, %v628
    %v630 = vrot.slane %v629, 2
    %v631 = vadd.f32 %v629, %v630
    %v632 = vrot.slane %v631, 1
    %v633 = vadd.f32 %v631, %v632
    %v634 = vsel %vm68, %v590, 0.0
    %v635 = vrot.slane %v634, 4
    %v636 = vadd.f32 %v634, %v635
    %v637 = vrot.slane %v636, 2
    %v638 = vadd.f32 %v636, %v637
    %v639 = vrot.slane %v638, 1
    %v640 = vadd.f32 %v638, %v639
    %v641 = vsel %vm68, %v591, 0.0
    %v642 = vrot.slane %v641, 4
    %v643 = vadd.f32 %v641, %v642
    %v644 = vrot.slane %v643, 2
    %v645 = vadd.f32 %v643, %v644
    %v646 = vrot.slane %v645, 1
    %v647 = vadd.f32 %v645, %v646
    %v656 = vsel %vm287, %v605, %v598
    %v657 = vsel %vm289, %v612, %v656
    %v658 = vsel %vm291, %v619, %v657
    %v659 = vsel %vm293, %v626, %v658
    %v660 = vsel %vm295, %v633, %v659
    %v661 = vsel %vm297, %v640, %v660
    %v662 = vsel %vm299, %v647, %v661
    %664 = vst.msk [vmem:[#allocation7] sm:$0xff] %vm68, %v662
    // Predicated region
    $region26: #{tpu_custom_call.1} parent=1 // pred_check
      _
    $region27: #{tpu_custom_call.1} parent=1 // pred_check_branch
      %666 = sbr.rel (0) target = $region29
    $region28: #{tpu_custom_call.1} parent=1 // pred_region
      %s668 = ssub.s32 128, 128
      %669 = vsyncadd [#allocation4], %s668
      %s671 = sshll.u32 [#allocation7], 4
      %s672 = int_to_ptr.vmem [resolvable:$true] %s671
      %674 = dma.vmem_to_hbm [thread:$0]  %s672, 128, %s4, [#allocation4]
    $region29: #{tpu_custom_call.1} parent=1 // pred_fallthru
      _
    // Predicated region
    $region30: #{tpu_custom_call.1} parent=1 // pred_check
      _
    $region31: #{tpu_custom_call.1} parent=1 // pred_check_branch
      %676 = sbr.rel (0) target = $region33
    $region32: #{tpu_custom_call.1} parent=1 // pred_region
      %s678 = ssub.s32 128, 128
      %679 = vsyncadd [#allocation9], %s678
      %s681 = sshll.u32 [#allocation8], 4
      %s682 = int_to_ptr.vmem [resolvable:$true] %s681
      %684 = dma.vmem_to_hbm [thread:$0]  %s682, 128, %s5, [#allocation9]
    $region33: #{tpu_custom_call.1} parent=1 // pred_fallthru
      _
    // Predicated region
    $region34: #{tpu_custom_call.1} parent=1 // pred_check
      _
    $region35: #{tpu_custom_call.1} parent=1 // pred_check_branch
      %686 = sbr.rel (0) target = $region37
    $region36: #{tpu_custom_call.1} parent=1 // pred_region
      %687 = dma.done [#allocation4], 128
    $region37: #{tpu_custom_call.1} parent=1 // pred_fallthru
      _
    // Predicated region
    $region38: #{tpu_custom_call.1} parent=1 // pred_check
      _
    $region39: #{tpu_custom_call.1} parent=1 // pred_check_branch
      %689 = sbr.rel (0) target = $region41
    $region40: #{tpu_custom_call.1} parent=1 // pred_region
      %690 = dma.done [#allocation9], 128
    $region41: #{tpu_custom_call.1} parent=1 // pred_fallthru
      _
    %691 = vsyncpa [#allocation3], 1
    %692 = vsyncpa [#allocation6], 1
    %693 = vsyncpa [#allocation4], 1
    %694 = vsyncpa [#allocation9], 1

</llo_original>
